<compile_context>
chip_gen: v5e
topology: v5e:2x2
jax: 0.10.0
libtpu: 0.0.40
codegen_flags: <defaults>
</compile_context>

<pallas_src>
import jax
import jax.numpy as jnp
from jax.experimental import pallas as pl
from jax.experimental.pallas import tpu as pltpu

_LANE = 128
assert _LANE % 4 == 0  # lane & 3 == coordinate id; the whole layout relies on this


def _round_up(x, m):
    return ((x + m - 1) // m) * m


def _num_tensorcores() -> int:
    """TensorCores visible to a single Pallas program on device 0."""
    try:
        kind = jax.devices()[0].device_kind.lower()
    except Exception:
        return 1
    # v7x: 2 TCs/chip; v4-style megacore also exposes 2 cores to one program.
    return 2 if ("v7" in kind or "v4" in kind) else 1


def _pick_tile_rows(rows, max_tile_rows, min_tiles):
    """Largest multiple-of-8 divisor of `rows` that is <= max_tile_rows and,
    when achievable, yields at least `min_tiles` grid steps."""
    cap = max(8, (min(max_tile_rows, rows) // 8) * 8)
    for need in (min_tiles, 1):
        for t in range(cap, 7, -8):
            if rows % t == 0 and rows // t >= need:
                return t
    return 8  # rows is always a multiple of 8, so t=8 divides it


def _clip_kernel(x_ref, lo_ref, hi_ref, o_ref):
    """One max + one min per element on a lane-dense (tile_rows, 128) tile.

    Every tile starts at a 128-aligned flat offset from element 0 of boxes and
    128 % 4 == 0, so lane i always holds coordinate (i & 3) of some box.  The
    (1, 128) lo/hi rows encode the per-coordinate bounds and sublane-broadcast
    against the tile.  NOTE: changing the flattening (e.g. per-batch slabs with
    non-multiple-of-4 row starts) would silently break this mapping.
    """
    x = x_ref[...].astype(jnp.float32)            # no-op for f32 boxes
    o_ref[...] = jnp.minimum(jnp.maximum(x, lo_ref[...]),
                             hi_ref[...]).astype(o_ref.dtype)


def clip_boxes(boxes, img, *, max_tile_rows=1024, small_bypass_elems=65536):
    """JAX/Pallas equivalent of ClipBoxes.forward(boxes, img)."""
    B, N, four = boxes.shape
    assert four == 4, "boxes must have shape (B, num_boxes, 4)"
    assert jnp.issubdtype(boxes.dtype, jnp.floating), "boxes must be float-typed"
    _, _, H, W = img.shape                        # NCHW; H, W are static

    # Per-coordinate bounds, built once in the wrapper (f32 so W/H don't round
    # for low-precision box dtypes).  Lane pattern cycles x1,y1,x2,y2.
    coord = jnp.arange(_LANE, dtype=jnp.int32) % 4
    lo_row = jnp.where(coord < 2, 0.0, -jnp.inf).astype(jnp.float32)[None, :]
    hi_row = jnp.where(coord < 2, jnp.inf,
                       jnp.where(coord == 2, float(W), float(H))
                       ).astype(jnp.float32)[None, :]

    total = B * N * 4

    # Tiny inputs: a Pallas launch (plus any pad/slice) is pure overhead; let
    # XLA fuse a plain clamp instead.
    if total < small_bypass_elems:
        lo4, hi4 = lo_row[0, :4], hi_row[0, :4]
        return jnp.minimum(jnp.maximum(boxes.astype(jnp.float32), lo4),
                           hi4).astype(boxes.dtype)

    min_tiles = 2 if _num_tensorcores() >= 2 else 1

    # Fast path: (B*N*4) already a multiple of 8*128 -> metadata-only reshapes.
    if total % (_LANE * 8) == 0:
        rows = total // _LANE
        needs_pad = False
    else:                                         # fallback: pad to (rows, 128)
        rows = max(8, _round_up(pl.cdiv(total, _LANE), 8))
        needs_pad = True
    if rows < 2 * 8:
        min_tiles = 1
    tile_rows = _pick_tile_rows(rows, max_tile_rows, min_tiles)
    padded_total = rows * _LANE

    flat = boxes.reshape(-1)
    if needs_pad:
        flat = jnp.pad(flat, (0, padded_total - total))
    x2d = flat.reshape(rows, _LANE)

    itemsize = jnp.dtype(boxes.dtype).itemsize
    out2d = pl.pallas_call(
        _clip_kernel,
        out_shape=jax.ShapeDtypeStruct((rows, _LANE), boxes.dtype),
        grid_spec=pl.GridSpec(
            grid=(rows // tile_rows,),
            in_specs=[
                pl.BlockSpec((tile_rows, _LANE), lambda i: (i, 0)),
                pl.BlockSpec((1, _LANE), lambda i: (0, 0)),   # lo, resident
                pl.BlockSpec((1, _LANE), lambda i: (0, 0)),   # hi, resident
            ],
            out_specs=pl.BlockSpec((tile_rows, _LANE), lambda i: (i, 0)),
        ),
        compiler_params=pltpu.CompilerParams(
            dimension_semantics=("parallel",)),
        cost_estimate=pl.CostEstimate(
            flops=2 * padded_total,
            transcendentals=0,
            bytes_accessed=2 * padded_total * itemsize + 2 * _LANE * 4,
        ),
    )(x2d, lo_row, hi_row)

    if needs_pad:
        return out2d.reshape(-1)[:total].reshape(B, N, 4)
    return out2d.reshape(B, N, 4)


def _clip_boxes_ref(boxes, img):
    _, _, H, W = img.shape
    ref = boxes.at[:, :, 0].set(jnp.maximum(boxes[:, :, 0], 0.0))
    ref = ref.at[:, :, 1].set(jnp.maximum(ref[:, :, 1], 0.0))
    ref = ref.at[:, :, 2].set(jnp.minimum(ref[:, :, 2], float(W)))
    ref = ref.at[:, :, 3].set(jnp.minimum(ref[:, :, 3], float(H)))
    return ref


if __name__ == "__main__":
    key = jax.random.PRNGKey(0)
    kb1, kb2, kb3, kb4, ki = jax.random.split(key, 5)

    C, Himg, Wimg = 4, 16, 16
    img = jax.random.normal(ki, (2, C, Himg, Wimg), dtype=jnp.float32)

    def check(boxes, **kw):
        out = jax.block_until_ready(clip_boxes(boxes, img, **kw))
        ref = _clip_boxes_ref(boxes, img)
        assert out.shape == boxes.shape and out.dtype == boxes.dtype
        assert jnp.allclose(out, ref), "Pallas ClipBoxes mismatch vs reference"

    # 1) Typical tiny module shape -> small-input bypass path.
    check(jax.random.uniform(kb1, (2, 8, 4), jnp.float32, -10.0, 30.0))
    # 2) Pallas kernel, no-pad fast path (total % 1024 == 0).
    check(jax.random.uniform(kb2, (2, 1024, 4), jnp.float32, -10.0, 30.0),
          small_bypass_elems=0)
    # 3) Pallas kernel, pad fallback (odd box count).
    check(jax.random.uniform(kb3, (2, 7, 4), jnp.float32, -10.0, 30.0),
          small_bypass_elems=0)
    # 4) Realistic anchor count -> kernel path by default, larger tiles.
    check(jax.random.uniform(kb4, (2, 16384, 4), jnp.float32, -10.0, 30.0))

    print("KERNEL_OK")
</pallas_src>

<mosaic_0001>
module attributes {stable_mosaic.version = 11 : i64} {
  func.func @_clip_kernel(%arg0: i32, %arg1: memref<64x128xf32, #tpu.memory_space<vmem>>, %arg2: memref<1x128xf32, #tpu.memory_space<vmem>>, %arg3: memref<1x128xf32, #tpu.memory_space<vmem>>, %arg4: memref<64x128xf32, #tpu.memory_space<vmem>>) attributes {dimension_semantics = [#tpu.dimension_semantics<parallel>], iteration_bounds = array<i64: 1>, scalar_prefetch = 0 : i64, scratch_operands = 0 : i64, tpu.core_type = #tpu.core_type<tc>, window_params = [{transform_indices = @transform_0, window_bounds = array<i64: 64, 128>}, {pipeline_mode = #tpu.pipeline_mode<synchronous>, transform_indices = @transform_1, window_bounds = array<i64: 1, 128>}, {pipeline_mode = #tpu.pipeline_mode<synchronous>, transform_indices = @transform_2, window_bounds = array<i64: 1, 128>}, {transform_indices = @transform_3, window_bounds = array<i64: 64, 128>}]} {
    %c0 = arith.constant 0 : index
    %c0_0 = arith.constant 0 : index
    %0 = vector.load %arg1[%c0, %c0_0] : memref<64x128xf32, #tpu.memory_space<vmem>>, vector<64x128xf32>
    %c0_1 = arith.constant 0 : index
    %c0_2 = arith.constant 0 : index
    %1 = vector.load %arg2[%c0_1, %c0_2] : memref<1x128xf32, #tpu.memory_space<vmem>>, vector<1x128xf32>
    %2 = vector.broadcast %1 : vector<1x128xf32> to vector<64x128xf32>
    %3 = arith.maximumf %0, %2 : vector<64x128xf32>
    %c0_3 = arith.constant 0 : index
    %c0_4 = arith.constant 0 : index
    %4 = vector.load %arg3[%c0_3, %c0_4] : memref<1x128xf32, #tpu.memory_space<vmem>>, vector<1x128xf32>
    %5 = vector.broadcast %4 : vector<1x128xf32> to vector<64x128xf32>
    %6 = arith.minimumf %3, %5 : vector<64x128xf32>
    %c0_5 = arith.constant 0 : index
    %c0_6 = arith.constant 0 : index
    %7 = vector.load %arg4[%c0_5, %c0_6] : memref<64x128xf32, #tpu.memory_space<vmem>>, vector<64x128xf32>
    tpu.vector_store %arg4[%c0_5, %c0_6], %6 {strides = array<i32>} : memref<64x128xf32, #tpu.memory_space<vmem>>, vector<64x128xf32>,
    return
  }
  func.func @transform_0(%arg0: i32) -> (i32, i32) {
    %c0_i32 = arith.constant 0 : i32
    %c0_i32_0 = arith.constant 0 : i32
    return %arg0, %c0_i32 : i32, i32
  }
  func.func @transform_1(%arg0: i32) -> (i32, i32) {
    %c0_i32 = arith.constant 0 : i32
    %c0_i32_0 = arith.constant 0 : i32
    %c0_i32_1 = arith.constant 0 : i32
    return %c0_i32, %c0_i32_0 : i32, i32
  }
  func.func @transform_2(%arg0: i32) -> (i32, i32) {
    %c0_i32 = arith.constant 0 : i32
    %c0_i32_0 = arith.constant 0 : i32
    %c0_i32_1 = arith.constant 0 : i32
    return %c0_i32, %c0_i32_0 : i32, i32
  }
  func.func @transform_3(%arg0: i32) -> (i32, i32) {
    %c0_i32 = arith.constant 0 : i32
    %c0_i32_0 = arith.constant 0 : i32
    return %arg0, %c0_i32 : i32, i32
  }
}

</mosaic_0001>

<llo_original>
// kernel: tpu_custom_call.1
$region0: #{tpu_custom_call.1}
  #allocation0 [shape = 'u32[]', space=smem, size = 0x4, offset = 0x4, fixed_abs, tag = 'smem constant byte address 0x4 - core index']
  #allocation1 [shape = 'u32[72,128]{1,0:T(1,128)}', space=vmem, size = 0x9000, scoped, tag = 'internal scratch']
  %s0 = inlined_call_operand.hbm [shape: f32[64,128], index: 0, kind: input, shape index: {}]
  %s1 = inlined_call_operand.hbm [shape: f32[1,128], index: 1, kind: input, shape index: {}]
  %s2 = inlined_call_operand.vmem [shape: f32[1,128], index: 2, kind: input, shape index: {}]
  %s3 = inlined_call_operand.hbm [shape: f32[64,128], index: 3, kind: output, shape index: {}]
  %s4 = sld [smem:[#allocation0]]
  $region30: #{tpu_custom_call.1} parent=0
    _
  %s6 = ssub.s32 1, %s4
  %s7 = scalar_select 0, %s6, %s4
  $region1: #{tpu_custom_call.1} parent=0
    #allocation2 [shape = 'u8[32768]{0}', space=vmem, size = 0x8000, scoped, tag = 'input window, operand 0, single buffered']
    #allocation3 [shape = 's32[1]{0}', space=sflag, size = 0x4, scoped, tag = 'scoped memory for tpu_custom_call.1']
    #allocation4 [shape = 's32[1]{0}', space=sflag, size = 0x4, scoped, tag = 'scoped memory for tpu_custom_call.1']
    #allocation5 [shape = 'u8[512]{0}', space=vmem, size = 0x400, scoped, tag = 'input window, operand 1, single buffered']
    #allocation6 [shape = 's32[1]{0}', space=sflag, size = 0x4, scoped, tag = 'scoped memory for tpu_custom_call.1']
    #allocation7 [shape = 'u8[32768]{0}', space=vmem, size = 0x8000, scoped, tag = 'output window, operand 0, single buffered']
    %8 = vsyncpa [#allocation3], 0
    %9 = vsyncpa [#allocation6], 0
    %10 = vsyncpa [#allocation4], 0
    // Predicated region
    $region2: #{tpu_custom_call.1} parent=1 // pred_check
      _
    $region3: #{tpu_custom_call.1} parent=1 // pred_check_branch
      %12 = sbr.rel (0) target = $region5
    $region4: #{tpu_custom_call.1} parent=1 // pred_region
      %14 = vsyncadd [#allocation3], 0
      %s15 = sshll.u32 %s0, 4
      %s16 = int_to_ptr.hbm [resolvable:$true] %s15
      %s17 = sshll.u32 [#allocation2], 4
      %s18 = int_to_ptr.vmem [resolvable:$true] %s17
      %23 = dma.hbm_to_vmem [thread:$0]  %s16, 1024, %s18, [#allocation3], 128, 128, 8
    $region5: #{tpu_custom_call.1} parent=1 // pred_fallthru
      _
    // Predicated region
    $region6: #{tpu_custom_call.1} parent=1 // pred_check
      _
    $region7: #{tpu_custom_call.1} parent=1 // pred_check_branch
      %25 = sbr.rel (0) target = $region9
    $region8: #{tpu_custom_call.1} parent=1 // pred_region
      %27 = vsyncadd [#allocation6], 0
      %s29 = sshll.u32 %s1, 4
      %s30 = int_to_ptr.hbm [resolvable:$true] %s29
      %s31 = sshll.u32 [#allocation5], 4
      %s32 = int_to_ptr.vmem [resolvable:$true] %s31
      %34 = dma.hbm_to_vmem [thread:$0]  %s30, 16, %s32, [#allocation6]
    $region9: #{tpu_custom_call.1} parent=1 // pred_fallthru
      _
    // Predicated region
    $region10: #{tpu_custom_call.1} parent=1 // pred_check
      _
    $region11: #{tpu_custom_call.1} parent=1 // pred_check_branch
      %36 = sbr.rel (0) target = $region13
    $region12: #{tpu_custom_call.1} parent=1 // pred_region
      _
    $region13: #{tpu_custom_call.1} parent=1 // pred_fallthru
      _
    // Predicated region
    $region14: #{tpu_custom_call.1} parent=1 // pred_check
      _
    $region15: #{tpu_custom_call.1} parent=1 // pred_check_branch
      %38 = sbr.rel (0) target = $region17
    $region16: #{tpu_custom_call.1} parent=1 // pred_region
      %40 = dma.done [#allocation3], 1024
    $region17: #{tpu_custom_call.1} parent=1 // pred_fallthru
      _
    // Predicated region
    $region18: #{tpu_custom_call.1} parent=1 // pred_check
      _
    $region19: #{tpu_custom_call.1} parent=1 // pred_check_branch
      %42 = sbr.rel (0) target = $region21
    $region20: #{tpu_custom_call.1} parent=1 // pred_region
      %44 = dma.done [#allocation6], 16
    $region21: #{tpu_custom_call.1} parent=1 // pred_fallthru
      _
    %v45 = vld [vmem:[#allocation2] sm:$0xff]
    %v46 = vld [vmem:[#allocation2 + $0x8] sm:$0xff]
    %v47 = vld [vmem:[#allocation2 + $0x10] sm:$0xff]
    %v48 = vld [vmem:[#allocation2 + $0x18] sm:$0xff]
    %v49 = vld [vmem:[#allocation2 + $0x20] sm:$0xff]
    %v50 = vld [vmem:[#allocation2 + $0x28] sm:$0xff]
    %v51 = vld [vmem:[#allocation2 + $0x30] sm:$0xff]
    %v52 = vld [vmem:[#allocation2 + $0x38] sm:$0xff]
    %v53 = vld [vmem:[#allocation5] sm:$0x1]
    %v55 = vperm.slane %v53, 0
    %v57 = vmax.f32 %v45, %v55
    %v58 = vmax.f32 %v46, %v55
    %v59 = vmax.f32 %v47, %v55
    %v60 = vmax.f32 %v48, %v55
    %v61 = vmax.f32 %v49, %v55
    %v62 = vmax.f32 %v50, %v55
    %v63 = vmax.f32 %v51, %v55
    %v64 = vmax.f32 %v52, %v55
    %v65 = vld [vmem:[%s2] sm:$0x1]
    %v67 = vperm.slane %v65, 0
    %v69 = vmin.f32 %v57, %v67
    %v70 = vmin.f32 %v58, %v67
    %v71 = vmin.f32 %v59, %v67
    %v72 = vmin.f32 %v60, %v67
    %v73 = vmin.f32 %v61, %v67
    %v74 = vmin.f32 %v62, %v67
    %v75 = vmin.f32 %v63, %v67
    %v76 = vmin.f32 %v64, %v67
    %77 = vst [vmem:[#allocation7] sm:$0xff] %v69
    %78 = vst [vmem:[#allocation7 + $0x8] sm:$0xff] %v70
    %79 = vst [vmem:[#allocation7 + $0x10] sm:$0xff] %v71
    %80 = vst [vmem:[#allocation7 + $0x18] sm:$0xff] %v72
    %81 = vst [vmem:[#allocation7 + $0x20] sm:$0xff] %v73
    %82 = vst [vmem:[#allocation7 + $0x28] sm:$0xff] %v74
    %83 = vst [vmem:[#allocation7 + $0x30] sm:$0xff] %v75
    %84 = vst [vmem:[#allocation7 + $0x38] sm:$0xff] %v76
    // Predicated region
    $region22: #{tpu_custom_call.1} parent=1 // pred_check
      _
    $region23: #{tpu_custom_call.1} parent=1 // pred_check_branch
      %86 = sbr.rel (0) target = $region25
    $region24: #{tpu_custom_call.1} parent=1 // pred_region
      %88 = vsyncadd [#allocation4], 0
      %s89 = sshll.u32 [#allocation7], 4
      %s90 = int_to_ptr.vmem [resolvable:$true] %s89
      %s91 = sshll.u32 %s3, 4
      %s92 = int_to_ptr.hbm [resolvable:$true] %s91
      %97 = dma.vmem_to_hbm [thread:$0]  %s90, 1024, %s92, [#allocation4], 128, 128, 8
    $region25: #{tpu_custom_call.1} parent=1 // pred_fallthru
      _
    // Predicated region
    $region26: #{tpu_custom_call.1} parent=1 // pred_check
      _
    $region27: #{tpu_custom_call.1} parent=1 // pred_check_branch
      %99 = sbr.rel (0) target = $region29
    $region28: #{tpu_custom_call.1} parent=1 // pred_region
      %101 = dma.done [#allocation4], 1024
    $region29: #{tpu_custom_call.1} parent=1 // pred_fallthru
      _
    %102 = vsyncpa [#allocation3], 1
    %103 = vsyncpa [#allocation6], 1
    %104 = vsyncpa [#allocation4], 1

</llo_original>
